<compile_context>
chip_gen: v6e
topology: v6e:2x2x1
jax: 0.10.0
libtpu: 0.0.40
codegen_flags: <defaults>
</compile_context>

<pallas_src>
import jax
import jax.numpy as jnp
from jax.experimental import pallas as pl
from jax.experimental.pallas import tpu as pltpu


def _round_up(x, m):
    return (x + m - 1) // m * m


def _pick_tile(n_pad, cap):
    """Largest power-of-two multiple of 128 that divides n_pad and is <= cap."""
    t = 128
    while t * 2 <= cap and n_pad % (t * 2) == 0:
        t *= 2
    return t


# Budget (bytes) for keeping the source-feature operand fully VMEM-resident in
# the tiled path (conservative vs. v5e's 16 MiB default scoped VMEM).
_RESIDENT_BYTES = 4 * 1024 * 1024

# Graphs with n_pad <= this run the whole forward in a single pallas_call.
_SMALL_GRAPH_THRESHOLD = 1024


def _masked_log_softmax(z, valid_cols):
    """Numerically-safe log-softmax over dim=1, masking padded class columns."""
    col = jax.lax.broadcasted_iota(jnp.int32, z.shape, 1)
    z = jnp.where(col < valid_cols, z, -1e30)     # stays f32 until final cast
    m = jnp.max(z, axis=1, keepdims=True)
    zz = z - m
    lse = jnp.log(jnp.sum(jnp.exp(zz), axis=1, keepdims=True))
    return zz - lse


# ----------------------------------------------------------------------------
# Normalized adjacency (self loops + deg^-0.5 symmetric norm), built directly
# into the padded final-dtype buffer.
# ----------------------------------------------------------------------------
def _self_loop_norm(edge_index, num_nodes):
    src = edge_index[0]
    dst = edge_index[1]
    loops = jnp.arange(num_nodes, dtype=edge_index.dtype)
    src = jnp.concatenate([src, loops])
    dst = jnp.concatenate([dst, loops])
    deg = jnp.zeros((num_nodes,), jnp.float32).at[src].add(1.0)
    deg_inv_sqrt = jnp.where(deg > 0, deg ** -0.5, 0.0)
    # NOTE: degree from src only == symmetric norm for undirected edge lists
    # (matches MyGCNConv.message exactly).
    norm = deg_inv_sqrt[src] * deg_inv_sqrt[dst]
    return src, dst, norm


def build_normalized_adjacency_padded(edge_index, num_nodes, n_pad,
                                      dtype=jnp.bfloat16):
    src, dst, norm = _self_loop_norm(edge_index, num_nodes)
    # out[dst] += norm * x[src]  ==>  A_hat[dst, src] += norm
    a = jnp.zeros((n_pad, n_pad), jnp.float32).at[dst, src].add(norm)
    return a.astype(dtype)


def build_normalized_adjacency(edge_index, num_nodes):
    src, dst, norm = _self_loop_norm(edge_index, num_nodes)
    return jnp.zeros((num_nodes, num_nodes), jnp.float32).at[dst, src].add(norm)


# ----------------------------------------------------------------------------
# Path 1: small graphs -- entire 2-layer forward in ONE pallas_call,
# everything VMEM-resident.
# ----------------------------------------------------------------------------
def make_fused_small_kernel(valid_cols):
    def kernel(a_ref, x_ref, w1_ref, w2_ref, o_ref):
        a = a_ref[...]
        # layer 1: relu(A @ (X @ W1))   (Dropout(0.6) identity in eval)
        xw1 = jnp.dot(x_ref[...], w1_ref[...],
                      preferred_element_type=jnp.float32)
        h1 = jnp.dot(a, xw1.astype(jnp.bfloat16),
                     preferred_element_type=jnp.float32)
        h1 = jnp.maximum(h1, 0.0).astype(jnp.bfloat16)
        # layer 2: log_softmax(A @ (H1 @ W2))
        hw2 = jnp.dot(h1, w2_ref[...], preferred_element_type=jnp.float32)
        z = jnp.dot(a, hw2.astype(jnp.bfloat16),
                    preferred_element_type=jnp.float32)
        o_ref[...] = _masked_log_softmax(z, valid_cols).astype(o_ref.dtype)

    return kernel


def gcn_fused_small_pallas(a, x, w1, w2, valid_cols):
    n_pad = a.shape[0]
    f_pad = x.shape[1]
    h_pad = w1.shape[1]
    c_pad = w2.shape[1]
    return pl.pallas_call(
        make_fused_small_kernel(valid_cols),
        out_shape=jax.ShapeDtypeStruct((n_pad, c_pad), jnp.float32),
        grid_spec=pltpu.PrefetchScalarGridSpec(
            num_scalar_prefetch=0,
            grid=(1,),
            in_specs=[
                pl.BlockSpec((n_pad, n_pad), lambda i: (0, 0)),
                pl.BlockSpec((n_pad, f_pad), lambda i: (0, 0)),
                pl.BlockSpec((f_pad, h_pad), lambda i: (0, 0)),
                pl.BlockSpec((h_pad, c_pad), lambda i: (0, 0)),
            ],
            out_specs=pl.BlockSpec((n_pad, c_pad), lambda i: (0, 0)),
        ),
        compiler_params=pltpu.CompilerParams(
            dimension_semantics=("arbitrary",)),
    )(a, x, w1, w2)


# ----------------------------------------------------------------------------
# Path 2: tiled, fused propagation kernels for larger graphs.
# ----------------------------------------------------------------------------
def make_layer1_kernel(tk, x_resident):
    """acc += A_tile @ (X_k @ W1); epilogue: out = relu(acc) @ W2."""

    def kernel(a_ref, x_ref, w1_ref, w2_ref, o_ref, acc_ref):
        k = pl.program_id(1)

        @pl.when(k == 0)
        def _():
            acc_ref[...] = jnp.zeros_like(acc_ref)

        if x_resident:
            start = pl.multiple_of(k * tk, tk)
            x_k = x_ref[pl.ds(start, tk), :]
        else:
            x_k = x_ref[...]
        h_k = jnp.dot(x_k, w1_ref[...], preferred_element_type=jnp.float32)
        acc_ref[...] += jnp.dot(a_ref[...], h_k.astype(jnp.bfloat16),
                                preferred_element_type=jnp.float32)

        @pl.when(k == pl.num_programs(1) - 1)
        def _():
            h1 = jnp.maximum(acc_ref[...], 0.0).astype(jnp.bfloat16)
            o_ref[...] = jnp.dot(
                h1, w2_ref[...], preferred_element_type=jnp.float32
            ).astype(o_ref.dtype)

    return kernel


def gcn_layer1_pallas(a, x, w1, w2, *, tm, tk):
    n_pad = a.shape[0]
    f_pad = x.shape[1]
    h_pad = w1.shape[1]
    c_pad = w2.shape[1]
    x_resident = (x.size * 2) <= _RESIDENT_BYTES
    if x_resident:
        x_spec = pl.BlockSpec((n_pad, f_pad), lambda i, k: (0, 0))
    else:
        x_spec = pl.BlockSpec((tk, f_pad), lambda i, k: (k, 0))
    return pl.pallas_call(
        make_layer1_kernel(tk, x_resident),
        out_shape=jax.ShapeDtypeStruct((n_pad, c_pad), jnp.bfloat16),
        grid_spec=pltpu.PrefetchScalarGridSpec(
            num_scalar_prefetch=0,
            grid=(n_pad // tm, n_pad // tk),
            in_specs=[
                pl.BlockSpec((tm, tk), lambda i, k: (i, k)),      # A_hat tile
                x_spec,                                           # X (resident)
                pl.BlockSpec((f_pad, h_pad), lambda i, k: (0, 0)),  # W1 resident
                pl.BlockSpec((h_pad, c_pad), lambda i, k: (0, 0)),  # W2 resident
            ],
            out_specs=pl.BlockSpec((tm, c_pad), lambda i, k: (i, 0)),
            scratch_shapes=[pltpu.VMEM((tm, h_pad), jnp.float32)],
        ),
        compiler_params=pltpu.CompilerParams(
            dimension_semantics=("parallel", "arbitrary")),
    )(a, x, w1, w2)


def make_layer2_kernel(tk, h_resident, valid_cols):
    """acc += A_tile @ HW2_k; epilogue: masked log-softmax."""

    def kernel(a_ref, h_ref, o_ref, acc_ref):
        k = pl.program_id(1)

        @pl.when(k == 0)
        def _():
            acc_ref[...] = jnp.zeros_like(acc_ref)

        if h_resident:
            start = pl.multiple_of(k * tk, tk)
            h_k = h_ref[pl.ds(start, tk), :]
        else:
            h_k = h_ref[...]
        acc_ref[...] += jnp.dot(a_ref[...], h_k,
                                preferred_element_type=jnp.float32)

        @pl.when(k == pl.num_programs(1) - 1)
        def _():
            o_ref[...] = _masked_log_softmax(
                acc_ref[...], valid_cols).astype(o_ref.dtype)

    return kernel


def gcn_layer2_pallas(a, hw2, valid_cols, *, tm, tk):
    n_pad = a.shape[0]
    c_pad = hw2.shape[1]
    h_resident = (hw2.size * 2) <= _RESIDENT_BYTES
    if h_resident:
        h_spec = pl.BlockSpec((n_pad, c_pad), lambda i, k: (0, 0))
    else:
        h_spec = pl.BlockSpec((tk, c_pad), lambda i, k: (k, 0))
    return pl.pallas_call(
        make_layer2_kernel(tk, h_resident, valid_cols),
        out_shape=jax.ShapeDtypeStruct((n_pad, c_pad), jnp.float32),
        grid_spec=pltpu.PrefetchScalarGridSpec(
            num_scalar_prefetch=0,
            grid=(n_pad // tm, n_pad // tk),
            in_specs=[
                pl.BlockSpec((tm, tk), lambda i, k: (i, k)),      # A_hat tile
                h_spec,                                           # HW2 (resident)
            ],
            out_specs=pl.BlockSpec((tm, c_pad), lambda i, k: (i, 0)),
            scratch_shapes=[pltpu.VMEM((tm, c_pad), jnp.float32)],
        ),
        compiler_params=pltpu.CompilerParams(
            dimension_semantics=("parallel", "arbitrary")),
    )(a, hw2)


# ----------------------------------------------------------------------------
# Full forward pass wrapper
# ----------------------------------------------------------------------------
def gcn4node_pallas(x, edge_index, w1, w2, *,
                    small_graph_threshold=_SMALL_GRAPH_THRESHOLD):
    n, f_in = x.shape
    hidden = w1.shape[1]
    out_channels = w2.shape[1]

    # Pad N only to 128 (lane width); hidden / classes to 128 (lane-dense
    # stores; do NOT pad to 256 - propagation is HBM-bound on A, not MXU).
    n_pad = _round_up(n, 128)
    f_pad = _round_up(f_in, 128)
    h_pad = _round_up(hidden, 128)
    c_pad = _round_up(out_channels, 128)

    a_p = build_normalized_adjacency_padded(edge_index, n, n_pad,
                                            dtype=jnp.bfloat16)
    x_p = jnp.zeros((n_pad, f_pad), jnp.bfloat16).at[:n, :f_in].set(
        x.astype(jnp.bfloat16))
    w1_p = jnp.zeros((f_pad, h_pad), jnp.bfloat16).at[:f_in, :hidden].set(
        w1.astype(jnp.bfloat16))
    w2_p = jnp.zeros((h_pad, c_pad), jnp.bfloat16).at[:hidden, :out_channels].set(
        w2.astype(jnp.bfloat16))

    if n_pad <= small_graph_threshold:
        # One launch: everything VMEM-resident.
        out = gcn_fused_small_pallas(a_p, x_p, w1_p, w2_p, out_channels)
    else:
        # Two fused launches. tm capped so the row grid has >= 2 tiles when
        # possible (v7x megacore); tk is an independent reduction-tile knob.
        tm = _pick_tile(n_pad, cap=min(512, max(128, n_pad // 2)))
        tk = _pick_tile(n_pad, cap=1024)
        hw2 = gcn_layer1_pallas(a_p, x_p, w1_p, w2_p, tm=tm, tk=tk)
        out = gcn_layer2_pallas(a_p, hw2, out_channels, tm=tm, tk=tk)

    return out[:n, :out_channels]


# ----------------------------------------------------------------------------
# Pure-JAX reference (f32) for a loose numerical check
# ----------------------------------------------------------------------------
def gcn4node_ref(x, edge_index, w1, w2):
    a = build_normalized_adjacency(edge_index, x.shape[0])
    h = a @ (x @ w1)
    h = jnp.maximum(h, 0.0)
    h = a @ (h @ w2)
    return jax.nn.log_softmax(h, axis=1)


def glorot(key, fan_in, fan_out):
    limit = jnp.sqrt(6.0 / (fan_in + fan_out))
    return jax.random.uniform(key, (fan_in, fan_out), jnp.float32, -limit, limit)


# ----------------------------------------------------------------------------
# Main
# ----------------------------------------------------------------------------
if __name__ == "__main__":
    key = jax.random.PRNGKey(0)
    k_x1, k_x2, k_w1, k_w2 = jax.random.split(key, 4)

    # Shapes consistent with the module: hidden_size=16, out_channels=7 fixed.
    in_channels = 16
    hidden = 16
    out_channels = 7

    def ring_edges(n):
        idx = jnp.arange(n, dtype=jnp.int32)
        nxt = (idx + 1) % n
        return jnp.stack(
            [jnp.concatenate([idx, nxt]), jnp.concatenate([nxt, idx])], axis=0)

    w1 = glorot(k_w1, in_channels, hidden)      # layer 1: in_channels -> 16
    w2 = glorot(k_w2, hidden, out_channels)     # layer 2: 16 -> 7

    # ---- test 1: tiny graph -> single fused pallas_call path ----
    N1 = 32
    x1 = jax.random.normal(k_x1, (N1, in_channels), jnp.float32)
    e1 = ring_edges(N1)
    out1 = jax.block_until_ready(gcn4node_pallas(x1, e1, w1, w2))
    assert out1.shape == (N1, out_channels)
    assert bool(jnp.all(jnp.abs(jnp.exp(out1).sum(axis=1) - 1.0) < 1e-3))
    ref1 = gcn4node_ref(x1, e1, w1, w2)
    assert bool(jnp.max(jnp.abs(out1 - ref1)) < 1e-1)  # loose: bf16 operands

    # ---- test 2: larger graph, force the tiled fused 2-call path ----
    N2 = 384
    x2 = jax.random.normal(k_x2, (N2, in_channels), jnp.float32)
    e2 = ring_edges(N2)
    out2 = jax.block_until_ready(
        gcn4node_pallas(x2, e2, w1, w2, small_graph_threshold=0))
    assert out2.shape == (N2, out_channels)
    assert bool(jnp.all(jnp.abs(jnp.exp(out2).sum(axis=1) - 1.0) < 1e-3))
    ref2 = gcn4node_ref(x2, e2, w1, w2)
    assert bool(jnp.max(jnp.abs(out2 - ref2)) < 1e-1)

    print("KERNEL_OK")
</pallas_src>

<mosaic_0001>
module attributes {stable_mosaic.version = 11 : i64} {
  func.func @kernel(%arg0: i32, %arg1: memref<128x128xbf16, #tpu.memory_space<vmem>>, %arg2: memref<128x128xbf16, #tpu.memory_space<vmem>>, %arg3: memref<128x128xbf16, #tpu.memory_space<vmem>>, %arg4: memref<128x128xbf16, #tpu.memory_space<vmem>>, %arg5: memref<128x128xf32, #tpu.memory_space<vmem>>) attributes {dimension_semantics = [#tpu.dimension_semantics<arbitrary>], iteration_bounds = array<i64: 1>, scalar_prefetch = 0 : i64, scratch_operands = 0 : i64, tpu.core_type = #tpu.core_type<tc>, window_params = [{pipeline_mode = #tpu.pipeline_mode<synchronous>, transform_indices = @transform_0, window_bounds = array<i64: 128, 128>}, {pipeline_mode = #tpu.pipeline_mode<synchronous>, transform_indices = @transform_1, window_bounds = array<i64: 128, 128>}, {pipeline_mode = #tpu.pipeline_mode<synchronous>, transform_indices = @transform_2, window_bounds = array<i64: 128, 128>}, {pipeline_mode = #tpu.pipeline_mode<synchronous>, transform_indices = @transform_3, window_bounds = array<i64: 128, 128>}, {pipeline_mode = #tpu.pipeline_mode<synchronous>, transform_indices = @transform_4, window_bounds = array<i64: 128, 128>}]} {
    %c0 = arith.constant 0 : index
    %c0_0 = arith.constant 0 : index
    %0 = vector.load %arg1[%c0, %c0_0] : memref<128x128xbf16, #tpu.memory_space<vmem>>, vector<128x128xbf16>
    %c0_1 = arith.constant 0 : index
    %c0_2 = arith.constant 0 : index
    %1 = vector.load %arg2[%c0_1, %c0_2] : memref<128x128xbf16, #tpu.memory_space<vmem>>, vector<128x128xbf16>
    %c0_3 = arith.constant 0 : index
    %c0_4 = arith.constant 0 : index
    %2 = vector.load %arg3[%c0_3, %c0_4] : memref<128x128xbf16, #tpu.memory_space<vmem>>, vector<128x128xbf16>
    %cst = arith.constant dense<0.000000e+00> : vector<128x128xf32>
    %3 = tpu.matmul %1, %2, %cst {dimension_numbers = #tpu.dot_dimension_numbers<[1], [0], [0], [1], [0, 0, 1, 1], [], []>} : vector<128x128xbf16>, vector<128x128xbf16>, vector<128x128xf32> -> vector<128x128xf32>
    %4 = arith.truncf %3 : vector<128x128xf32> to vector<128x128xbf16>
    %cst_5 = arith.constant dense<0.000000e+00> : vector<128x128xf32>
    %5 = tpu.matmul %0, %4, %cst_5 {dimension_numbers = #tpu.dot_dimension_numbers<[1], [0], [0], [1], [0, 0, 1, 1], [], []>} : vector<128x128xbf16>, vector<128x128xbf16>, vector<128x128xf32> -> vector<128x128xf32>
    %cst_6 = arith.constant 0.000000e+00 : f32
    %6 = vector.broadcast %cst_6 : f32 to vector<128x128xf32>
    %7 = arith.maximumf %5, %6 : vector<128x128xf32>
    %8 = arith.truncf %7 : vector<128x128xf32> to vector<128x128xbf16>
    %c0_7 = arith.constant 0 : index
    %c0_8 = arith.constant 0 : index
    %9 = vector.load %arg4[%c0_7, %c0_8] : memref<128x128xbf16, #tpu.memory_space<vmem>>, vector<128x128xbf16>
    %cst_9 = arith.constant dense<0.000000e+00> : vector<128x128xf32>
    %10 = tpu.matmul %8, %9, %cst_9 {dimension_numbers = #tpu.dot_dimension_numbers<[1], [0], [0], [1], [0, 0, 1, 1], [], []>} : vector<128x128xbf16>, vector<128x128xbf16>, vector<128x128xf32> -> vector<128x128xf32>
    %11 = arith.truncf %10 : vector<128x128xf32> to vector<128x128xbf16>
    %cst_10 = arith.constant dense<0.000000e+00> : vector<128x128xf32>
    %12 = tpu.matmul %0, %11, %cst_10 {dimension_numbers = #tpu.dot_dimension_numbers<[1], [0], [0], [1], [0, 0, 1, 1], [], []>} : vector<128x128xbf16>, vector<128x128xbf16>, vector<128x128xf32> -> vector<128x128xf32>
    %13 = tpu.iota {dimensions = array<i32: 1>} : vector<128x128xi32>
    %c7_i32 = arith.constant 7 : i32
    %14 = vector.broadcast %c7_i32 : i32 to vector<128x128xi32>
    %15 = arith.cmpi slt, %13, %14 : vector<128x128xi32>
    %cst_11 = arith.constant -1.000000e+30 : f32
    %16 = vector.broadcast %cst_11 : f32 to vector<128x128xf32>
    %17 = arith.select %15, %12, %16 : vector<128x128xi1>, vector<128x128xf32>
    %cst_12 = arith.constant dense<0xFF800000> : vector<128xf32>
    %18 = vector.multi_reduction <maximumf>, %17, %cst_12 [1] : vector<128x128xf32> to vector<128xf32>
    %19 = vector.shape_cast %18 : vector<128xf32> to vector<128x1xf32>
    %20 = vector.broadcast %19 : vector<128x1xf32> to vector<128x128xf32>
    %21 = arith.subf %17, %20 : vector<128x128xf32>
    %22 = math.exp %21 : vector<128x128xf32>
    %cst_13 = arith.constant dense<0.000000e+00> : vector<128xf32>
    %23 = vector.multi_reduction <add>, %22, %cst_13 [1] : vector<128x128xf32> to vector<128xf32>
    %24 = vector.shape_cast %23 : vector<128xf32> to vector<128x1xf32>
    %25 = math.log %24 : vector<128x1xf32>
    %26 = vector.broadcast %25 : vector<128x1xf32> to vector<128x128xf32>
    %27 = arith.subf %21, %26 : vector<128x128xf32>
    %c0_14 = arith.constant 0 : index
    %c0_15 = arith.constant 0 : index
    %28 = vector.load %arg5[%c0_14, %c0_15] : memref<128x128xf32, #tpu.memory_space<vmem>>, vector<128x128xf32>
    tpu.vector_store %arg5[%c0_14, %c0_15], %27 {strides = array<i32>} : memref<128x128xf32, #tpu.memory_space<vmem>>, vector<128x128xf32>,
    return
  }
  func.func @transform_0(%arg0: i32) -> (i32, i32) {
    %c0_i32 = arith.constant 0 : i32
    %c0_i32_0 = arith.constant 0 : i32
    %c0_i32_1 = arith.constant 0 : i32
    return %c0_i32, %c0_i32_0 : i32, i32
  }
  func.func @transform_1(%arg0: i32) -> (i32, i32) {
    %c0_i32 = arith.constant 0 : i32
    %c0_i32_0 = arith.constant 0 : i32
    %c0_i32_1 = arith.constant 0 : i32
    return %c0_i32, %c0_i32_0 : i32, i32
  }
  func.func @transform_2(%arg0: i32) -> (i32, i32) {
    %c0_i32 = arith.constant 0 : i32
    %c0_i32_0 = arith.constant 0 : i32
    %c0_i32_1 = arith.constant 0 : i32
    return %c0_i32, %c0_i32_0 : i32, i32
  }
  func.func @transform_3(%arg0: i32) -> (i32, i32) {
    %c0_i32 = arith.constant 0 : i32
    %c0_i32_0 = arith.constant 0 : i32
    %c0_i32_1 = arith.constant 0 : i32
    return %c0_i32, %c0_i32_0 : i32, i32
  }
  func.func @transform_4(%arg0: i32) -> (i32, i32) {
    %c0_i32 = arith.constant 0 : i32
    %c0_i32_0 = arith.constant 0 : i32
    %c0_i32_1 = arith.constant 0 : i32
    return %c0_i32, %c0_i32_0 : i32, i32
  }
}

</mosaic_0001>

<llo_original>
// kernel: tpu_custom_call.1
$region0: #{tpu_custom_call.1}
  #allocation0 [shape = 'u32[]', space=smem, size = 0x4, offset = 0x4, fixed_abs, tag = 'smem constant byte address 0x4 - core index']
  #allocation1 [shape = 'u32[144,128]{1,0:T(1,128)}', space=vmem, size = 0x12000, scoped, tag = 'internal scratch']
  %s0 = inlined_call_operand.hbm [shape: bf16[128,128], index: 0, kind: input, shape index: {}]
  %s1 = inlined_call_operand.hbm [shape: bf16[128,128], index: 1, kind: input, shape index: {}]
  %s2 = inlined_call_operand.hbm [shape: bf16[128,128], index: 2, kind: input, shape index: {}]
  %s3 = inlined_call_operand.hbm [shape: bf16[128,128], index: 3, kind: input, shape index: {}]
  %s4 = inlined_call_operand.hbm [shape: f32[128,128], index: 4, kind: output, shape index: {}]
  %s5 = sld [smem:[#allocation0]]
  $region42: #{tpu_custom_call.1} parent=0
    _
  %s7 = ssub.s32 1, %s5
  %s8 = scalar_select 0, %s7, %s5
  $region1: #{tpu_custom_call.1} parent=0
    #allocation2 [shape = 'u8[32768]{0}', space=vmem, size = 0x8000, scoped, tag = 'input window, operand 0, single buffered']
    #allocation3 [shape = 's32[1]{0}', space=sflag, size = 0x4, scoped, tag = 'scoped memory for tpu_custom_call.1']
    #allocation4 [shape = 's32[1]{0}', space=sflag, size = 0x4, scoped, tag = 'scoped memory for tpu_custom_call.1']
    #allocation5 [shape = 'u8[32768]{0}', space=vmem, size = 0x8000, scoped, tag = 'input window, operand 1, single buffered']
    #allocation6 [shape = 's32[1]{0}', space=sflag, size = 0x4, scoped, tag = 'scoped memory for tpu_custom_call.1']
    #allocation7 [shape = 'u8[32768]{0}', space=vmem, size = 0x8000, scoped, tag = 'input window, operand 2, single buffered']
    #allocation8 [shape = 'u8[32768]{0}', space=vmem, size = 0x8000, scoped, tag = 'input window, operand 3, single buffered']
    #allocation9 [shape = 's32[1]{0}', space=sflag, size = 0x4, scoped, tag = 'scoped memory for tpu_custom_call.1']
    #allocation10 [shape = 'u8[65536]{0}', space=vmem, size = 0x10000, scoped, tag = 'output window, operand 0, single buffered']
    %9 = vsyncpa [#allocation3], 0
    %10 = vsyncpa [#allocation6], 0
    %11 = vsyncpa [#allocation9], 0
    %12 = vsyncpa [#allocation4], 0
    // Predicated region
    $region2: #{tpu_custom_call.1} parent=1 // pred_check
      _
    $region3: #{tpu_custom_call.1} parent=1 // pred_check_branch
      %14 = sbr.rel (0) target = $region5
    $region4: #{tpu_custom_call.1} parent=1 // pred_region
      %s16 = ssub.s32 1024, 1024
      %17 = vsyncadd [#allocation3], %s16
      %s18 = sshll.u32 [#allocation2], 4
      %s19 = int_to_ptr.vmem [resolvable:$true] %s18
      %24 = dma.hbm_to_vmem [thread:$0]  %s0, 1024, %s19, [#allocation3], 64, 64, 4
    $region5: #{tpu_custom_call.1} parent=1 // pred_fallthru
      _
    // Predicated region
    $region6: #{tpu_custom_call.1} parent=1 // pred_check
      _
    $region7: #{tpu_custom_call.1} parent=1 // pred_check_branch
      %26 = sbr.rel (0) target = $region9
    $region8: #{tpu_custom_call.1} parent=1 // pred_region
      %s28 = ssub.s32 1024, 1024
      %29 = vsyncadd [#allocation6], %s28
      %s30 = sshll.u32 [#allocation5], 4
      %s31 = int_to_ptr.vmem [resolvable:$true] %s30
      %36 = dma.hbm_to_vmem [thread:$0]  %s1, 1024, %s31, [#allocation6], 64, 64, 4
    $region9: #{tpu_custom_call.1} parent=1 // pred_fallthru
      _
    // Predicated region
    $region10: #{tpu_custom_call.1} parent=1 // pred_check
      _
    $region11: #{tpu_custom_call.1} parent=1 // pred_check_branch
      %38 = sbr.rel (0) target = $region13
    $region12: #{tpu_custom_call.1} parent=1 // pred_region
      %s40 = ssub.s32 1024, 1024
      %41 = vsyncadd [#allocation6], %s40
      %s42 = sshll.u32 [#allocation7], 4
      %s43 = int_to_ptr.vmem [resolvable:$true] %s42
      %48 = dma.hbm_to_vmem [thread:$0]  %s2, 1024, %s43, [#allocation6], 64, 64, 4
    $region13: #{tpu_custom_call.1} parent=1 // pred_fallthru
      _
    // Predicated region
    $region14: #{tpu_custom_call.1} parent=1 // pred_check
      _
    $region15: #{tpu_custom_call.1} parent=1 // pred_check_branch
      %50 = sbr.rel (0) target = $region17
    $region16: #{tpu_custom_call.1} parent=1 // pred_region
      %s52 = ssub.s32 1024, 1024
      %53 = vsyncadd [#allocation9], %s52
      %s54 = sshll.u32 [#allocation8], 4
      %s55 = int_to_ptr.vmem [resolvable:$true] %s54
      %60 = dma.hbm_to_vmem [thread:$0]  %s3, 1024, %s55, [#allocation9], 64, 64, 4
    $region17: #{tpu_custom_call.1} parent=1 // pred_fallthru
      _
    // Predicated region
    $region18: #{tpu_custom_call.1} parent=1 // pred_check
      _
    $region19: #{tpu_custom_call.1} parent=1 // pred_check_branch
      %62 = sbr.rel (0) target = $region21
    $region20: #{tpu_custom_call.1} parent=1 // pred_region
      %63 = dma.done [#allocation3], 1024
    $region21: #{tpu_custom_call.1} parent=1 // pred_fallthru
      _
    // Predicated region
    $region22: #{tpu_custom_call.1} parent=1 // pred_check
      _
    $region23: #{tpu_custom_call.1} parent=1 // pred_check_branch
      %65 = sbr.rel (0) target = $region25
    $region24: #{tpu_custom_call.1} parent=1 // pred_region
      %66 = dma.done [#allocation6], 1024
    $region25: #{tpu_custom_call.1} parent=1 // pred_fallthru
      _
    // Predicated region
    $region26: #{tpu_custom_call.1} parent=1 // pred_check
      _
    $region27: #{tpu_custom_call.1} parent=1 // pred_check_branch
      %68 = sbr.rel (0) target = $region29
    $region28: #{tpu_custom_call.1} parent=1 // pred_region
      %69 = dma.done [#allocation6], 1024
    $region29: #{tpu_custom_call.1} parent=1 // pred_fallthru
      _
    // Predicated region
    $region30: #{tpu_custom_call.1} parent=1 // pred_check
      _
    $region31: #{tpu_custom_call.1} parent=1 // pred_check_branch
      %71 = sbr.rel (0) target = $region33
    $region32: #{tpu_custom_call.1} parent=1 // pred_region
      %72 = dma.done [#allocation9], 1024
    $region33: #{tpu_custom_call.1} parent=1 // pred_fallthru
      _
    %v74 = vld [vmem:[#allocation2] sm:$0xf]
    %v75 = vld [vmem:[#allocation2 + $0x4] sm:$0xf]
    %v76 = vld [vmem:[#allocation2 + $0x8] sm:$0xf]
    %v77 = vld [vmem:[#allocation2 + $0xc] sm:$0xf]
    %v78 = vld [vmem:[#allocation2 + $0x10] sm:$0xf]
    %v79 = vld [vmem:[#allocation2 + $0x14] sm:$0xf]
    %v80 = vld [vmem:[#allocation2 + $0x18] sm:$0xf]
    %v81 = vld [vmem:[#allocation2 + $0x1c] sm:$0xf]
    %v82 = vld [vmem:[#allocation2 + $0x20] sm:$0xf]
    %v83 = vld [vmem:[#allocation2 + $0x24] sm:$0xf]
    %v84 = vld [vmem:[#allocation2 + $0x28] sm:$0xf]
    %v85 = vld [vmem:[#allocation2 + $0x2c] sm:$0xf]
    %v86 = vld [vmem:[#allocation2 + $0x30] sm:$0xf]
    %v87 = vld [vmem:[#allocation2 + $0x34] sm:$0xf]
    %v88 = vld [vmem:[#allocation2 + $0x38] sm:$0xf]
    %v89 = vld [vmem:[#allocation2 + $0x3c] sm:$0xf]
    %v90 = vld [vmem:[#allocation5] sm:$0xf]
    %v91 = vld [vmem:[#allocation5 + $0x4] sm:$0xf]
    %v92 = vld [vmem:[#allocation5 + $0x8] sm:$0xf]
    %v93 = vld [vmem:[#allocation5 + $0xc] sm:$0xf]
    %v94 = vld [vmem:[#allocation5 + $0x10] sm:$0xf]
    %v95 = vld [vmem:[#allocation5 + $0x14] sm:$0xf]
    %v96 = vld [vmem:[#allocation5 + $0x18] sm:$0xf]
    %v97 = vld [vmem:[#allocation5 + $0x1c] sm:$0xf]
    %v98 = vld [vmem:[#allocation5 + $0x20] sm:$0xf]
    %v99 = vld [vmem:[#allocation5 + $0x24] sm:$0xf]
    %v100 = vld [vmem:[#allocation5 + $0x28] sm:$0xf]
    %v101 = vld [vmem:[#allocation5 + $0x2c] sm:$0xf]
    %v102 = vld [vmem:[#allocation5 + $0x30] sm:$0xf]
    %v103 = vld [vmem:[#allocation5 + $0x34] sm:$0xf]
    %v104 = vld [vmem:[#allocation5 + $0x38] sm:$0xf]
    %v105 = vld [vmem:[#allocation5 + $0x3c] sm:$0xf]
    %v106 = vld [vmem:[#allocation7] sm:$0xf]
    %v107 = vld [vmem:[#allocation7 + $0x4] sm:$0xf]
    %v108 = vld [vmem:[#allocation7 + $0x8] sm:$0xf]
    %v109 = vld [vmem:[#allocation7 + $0xc] sm:$0xf]
    %v110 = vld [vmem:[#allocation7 + $0x10] sm:$0xf]
    %v111 = vld [vmem:[#allocation7 + $0x14] sm:$0xf]
    %v112 = vld [vmem:[#allocation7 + $0x18] sm:$0xf]
    %v113 = vld [vmem:[#allocation7 + $0x1c] sm:$0xf]
    %v114 = vld [vmem:[#allocation7 + $0x20] sm:$0xf]
    %v115 = vld [vmem:[#allocation7 + $0x24] sm:$0xf]
    %v116 = vld [vmem:[#allocation7 + $0x28] sm:$0xf]
    %v117 = vld [vmem:[#allocation7 + $0x2c] sm:$0xf]
    %v118 = vld [vmem:[#allocation7 + $0x30] sm:$0xf]
    %v119 = vld [vmem:[#allocation7 + $0x34] sm:$0xf]
    %v120 = vld [vmem:[#allocation7 + $0x38] sm:$0xf]
    %v121 = vld [vmem:[#allocation7 + $0x3c] sm:$0xf]
    %v138 = vunpack.c.l.b16 %v90
    %v139 = vunpack.c.l.b16 %v91
    %v140 = vunpack.c.l.b16 %v92
    %v141 = vunpack.c.l.b16 %v93
    %v142 = vunpack.c.l.b16 %v94
    %v143 = vunpack.c.l.b16 %v95
    %v144 = vunpack.c.l.b16 %v96
    %v145 = vunpack.c.l.b16 %v97
    %v146 = vunpack.c.l.b16 %v98
    %v147 = vunpack.c.l.b16 %v99
    %v148 = vunpack.c.l.b16 %v100
    %v149 = vunpack.c.l.b16 %v101
    %v150 = vunpack.c.l.b16 %v102
    %v151 = vunpack.c.l.b16 %v103
    %v152 = vunpack.c.l.b16 %v104
    %v153 = vunpack.c.l.b16 %v105
    %v154 = vpack.c.b16 %v139, %v138
    %v155 = vpack.c.b16 %v141, %v140
    %v156 = vpack.c.b16 %v143, %v142
    %v157 = vpack.c.b16 %v145, %v144
    %v158 = vpack.c.b16 %v147, %v146
    %v159 = vpack.c.b16 %v149, %v148
    %v160 = vpack.c.b16 %v151, %v150
    %v161 = vpack.c.b16 %v153, %v152
    %v186 = vunpack.c.l.b16 %v106
    %v187 = vunpack.c.l.b16 %v107
    %v188 = vunpack.c.l.b16 %v108
    %v189 = vunpack.c.l.b16 %v109
    %v190 = vunpack.c.l.b16 %v110
    %v191 = vunpack.c.l.b16 %v111
    %v192 = vunpack.c.l.b16 %v112
    %v193 = vunpack.c.l.b16 %v113
    %v194 = vunpack.c.l.b16 %v114
    %v195 = vunpack.c.l.b16 %v115
    %v196 = vunpack.c.l.b16 %v116
    %v197 = vunpack.c.l.b16 %v117
    %v198 = vunpack.c.l.b16 %v118
    %v199 = vunpack.c.l.b16 %v119
    %v200 = vunpack.c.l.b16 %v120
    %v201 = vunpack.c.l.b16 %v121
    %v202 = vpack.c.b16 %v187, %v186
    %v203 = vpack.c.b16 %v189, %v188
    %v204 = vpack.c.b16 %v191, %v190
    %v205 = vpack.c.b16 %v193, %v192
    %v206 = vpack.c.b16 %v195, %v194
    %v207 = vpack.c.b16 %v197, %v196
    %v208 = vpack.c.b16 %v199, %v198
    %v209 = vpack.c.b16 %v201, %v200
    %218 = vmatprep.subr.bf16.mxu0 0
    %219 = vmatpush1.bf16.msra.mxu0 %v209
    %220 = vmatprep.subr.bf16.mxu0 0
    %221 = vmatpush1.bf16.msra.mxu0 %v208
    %222 = vmatprep.subr.bf16.mxu0 0
    %223 = vmatpush1.bf16.msra.mxu0 %v207
    %224 = vmatprep.subr.bf16.mxu0 0
    %225 = vmatpush1.bf16.msra.mxu0 %v206
    %226 = vmatprep.subr.bf16.mxu0 0
    %227 = vmatpush1.bf16.msra.mxu0 %v205
    %228 = vmatprep.subr.bf16.mxu0 0
    %229 = vmatpush1.bf16.msra.mxu0 %v204
    %230 = vmatprep.subr.bf16.mxu0 0
    %231 = vmatpush1.bf16.msra.mxu0 %v203
    %232 = vmatprep.subr.bf16.mxu0 0
    %233 = vmatpush1.bf16.msra.mxu0 %v202
    %234 = vmatprep.subr.bf16.mxu0 0
    %235 = vmatpush2.bf16.msra.mxu0 0
    %236 = vmatprep.subr.bf16.mxu0 0
    %237 = vmatpush2.bf16.msra.mxu0 0
    %238 = vmatprep.subr.bf16.mxu0 0
    %239 = vmatpush2.bf16.msra.mxu0 0
    %240 = vmatprep.subr.bf16.mxu0 0
    %241 = vmatpush2.bf16.msra.mxu0 0
    %242 = vmatprep.subr.bf16.mxu0 0
    %243 = vmatpush2.bf16.msra.mxu0 0
    %244 = vmatprep.subr.bf16.mxu0 0
    %245 = vmatpush2.bf16.msra.mxu0 0
    %246 = vmatprep.subr.bf16.mxu0 0
    %247 = vmatpush2.bf16.msra.mxu0 0
    %248 = vmatprep.subr.bf16.mxu0 0
    %249 = vmatpush2.bf16.msra.mxu0 0
    %250 = vmatprep.mubr.bf16.mxu0 0
    %251 = vmatmul.mubr.bf16.gmra.mxu0 %v154
    %v252 = vpop.f32.mrf.mxu0
    %v253 = vadd.f32 0.0, %v252
    %v254 = vpop.f32.mrf.mxu0
    %v255 = vpop.f32.mrf.mxu0
    %v256 = vadd.f32 0.0, %v255
    %v257 = vpop.f32.mrf.mxu0
    %258 = vmatprep.mubr.bf16.mxu0 0
    %259 = vmatmul.mubr.bf16.gmra.mxu0 %v155
    %v260 = vpop.f32.mrf.mxu0
    %v261 = vadd.f32 0.0, %v260
    %v262 = vpop.f32.mrf.mxu0
    %v263 = vpop.f32.mrf.mxu0
    %v264 = vadd.f32 0.0, %v263
    %v265 = vpop.f32.mrf.mxu0
    %266 = vmatprep.mubr.bf16.mxu0 0
    %267 = vmatmul.mubr.bf16.gmra.mxu0 %v156
    %v268 = vpop.f32.mrf.mxu0
    %v269 = vadd.f32 0.0, %v268
    %v270 = vpop.f32.mrf.mxu0
    %v271 = vpop.f32.mrf.mxu0
    %v272 = vadd.f32 0.0, %v271
    %v273 = vpop.f32.mrf.mxu0
    %274 = vmatprep.mubr.bf16.mxu0 0
    %275 = vmatmul.mubr.bf16.gmra.mxu0 %v157
    %v276 = vpop.f32.mrf.mxu0
    %v277 = vadd.f32 0.0, %v276
    %v278 = vpop.f32.mrf.mxu0
    %v279 = vpop.f32.mrf.mxu0
    %v280 = vadd.f32 0.0, %v279
    %v281 = vpop.f32.mrf.mxu0
    %282 = vmatprep.mubr.bf16.mxu0 0
    %283 = vmatmul.mubr.bf16.gmra.mxu0 %v158
    %v284 = vpop.f32.mrf.mxu0
    %v285 = vadd.f32 0.0, %v284
    %v286 = vpop.f32.mrf.mxu0
    %v287 = vpop.f32.mrf.mxu0
    %v288 = vadd.f32 0.0, %v287
    %v289 = vpop.f32.mrf.mxu0
    %290 = vmatprep.mubr.bf16.mxu0 0
    %291 = vmatmul.mubr.bf16.gmra.mxu0 %v159
    %v292 = vpop.f32.mrf.mxu0
    %v293 = vadd.f32 0.0, %v292
    %v294 = vpop.f32.mrf.mxu0
    %v295 = vpop.f32.mrf.mxu0
    %v296 = vadd.f32 0.0, %v295
    %v297 = vpop.f32.mrf.mxu0
    %298 = vmatprep.mubr.bf16.mxu0 0
    %299 = vmatmul.mubr.bf16.gmra.mxu0 %v160
    %v300 = vpop.f32.mrf.mxu0
    %v301 = vadd.f32 0.0, %v300
    %v302 = vpop.f32.mrf.mxu0
    %v303 = vpop.f32.mrf.mxu0
    %v304 = vadd.f32 0.0, %v303
    %v305 = vpop.f32.mrf.mxu0
    %306 = vmatprep.mubr.bf16.mxu0 0
    %307 = vmatmul.mubr.bf16.gmra.mxu0 %v161
    %v308 = vpop.f32.mrf.mxu0
    %v309 = vadd.f32 0.0, %v308
    %v310 = vpop.f32.mrf.mxu0
    %v311 = vpop.f32.mrf.mxu0
    %v312 = vadd.f32 0.0, %v311
    %v313 = vpop.f32.mrf.mxu0
    %314 = vdwg.mxu0
    %v315 = vpack.c.bf16 %v256, %v253
    %v316 = vpack.c.bf16 %v264, %v261
    %v317 = vpack.c.bf16 %v272, %v269
    %v318 = vpack.c.bf16 %v280, %v277
    %v319 = vpack.c.bf16 %v288, %v285
    %v320 = vpack.c.bf16 %v296, %v293
    %v321 = vpack.c.bf16 %v304, %v301
    %v322 = vpack.c.bf16 %v312, %v309
    %v339 = vunpack.c.l.b16 %v74
    %v340 = vunpack.c.l.b16 %v75
    %v341 = vunpack.c.l.b16 %v76
    %v342 = vunpack.c.l.b16 %v77
    %v343 = vunpack.c.l.b16 %v78
    %v344 = vunpack.c.l.b16 %v79
    %v345 = vunpack.c.l.b16 %v80
    %v346 = vunpack.c.l.b16 %v81
    %v347 = vunpack.c.l.b16 %v82
    %v348 = vunpack.c.l.b16 %v83
    %v349 = vunpack.c.l.b16 %v84
    %v350 = vunpack.c.l.b16 %v85
    %v351 = vunpack.c.l.b16 %v86
    %v352 = vunpack.c.l.b16 %v87
    %v353 = vunpack.c.l.b16 %v88
    %v354 = vunpack.c.l.b16 %v89
    %v355 = vpack.c.b16 %v340, %v339
    %v356 = vpack.c.b16 %v342, %v341
    %v357 = vpack.c.b16 %v344, %v343
    %v358 = vpack.c.b16 %v346, %v345
    %v359 = vpack.c.b16 %v348, %v347
    %v360 = vpack.c.b16 %v350, %v349
    %v361 = vpack.c.b16 %v352, %v351
    %v362 = vpack.c.b16 %v354, %v353
    %371 = vmatprep.subr.bf16.mxu0 0
    %372 = vmatpush1.bf16.msra.mxu0 %v322
    %373 = vmatprep.subr.bf16.mxu0 0
    %374 = vmatpush1.bf16.msra.mxu0 %v321
    %375 = vmatprep.subr.bf16.mxu0 0
    %376 = vmatpush1.bf16.msra.mxu0 %v320
    %377 = vmatprep.subr.bf16.mxu0 0
    %378 = vmatpush1.bf16.msra.mxu0 %v319
    %379 = vmatprep.subr.bf16.mxu0 0
    %380 = vmatpush1.bf16.msra.mxu0 %v318
    %381 = vmatprep.subr.bf16.mxu0 0
    %382 = vmatpush1.bf16.msra.mxu0 %v317
    %383 = vmatprep.subr.bf16.mxu0 0
    %384 = vmatpush1.bf16.msra.mxu0 %v316
    %385 = vmatprep.subr.bf16.mxu0 0
    %386 = vmatpush1.bf16.msra.mxu0 %v315
    %387 = vmatprep.subr.bf16.mxu0 0
    %388 = vmatpush2.bf16.msra.mxu0 0
    %389 = vmatprep.subr.bf16.mxu0 0
    %390 = vmatpush2.bf16.msra.mxu0 0
    %391 = vmatprep.subr.bf16.mxu0 0
    %392 = vmatpush2.bf16.msra.mxu0 0
    %393 = vmatprep.subr.bf16.mxu0 0
    %394 = vmatpush2.bf16.msra.mxu0 0
    %395 = vmatprep.subr.bf16.mxu0 0
    %396 = vmatpush2.bf16.msra.mxu0 0
    %397 = vmatprep.subr.bf16.mxu0 0
    %398 = vmatpush2.bf16.msra.mxu0 0
    %399 = vmatprep.subr.bf16.mxu0 0
    %400 = vmatpush2.bf16.msra.mxu0 0
    %401 = vmatprep.subr.bf16.mxu0 0
    %402 = vmatpush2.bf16.msra.mxu0 0
    %403 = vmatprep.mubr.bf16.mxu0 0
    %404 = vmatmul.mubr.bf16.gmra.mxu0 %v355
    %v405 = vpop.f32.mrf.mxu0
    %v406 = vadd.f32 0.0, %v405
    %v407 = vpop.f32.mrf.mxu0
    %v408 = vpop.f32.mrf.mxu0
    %v409 = vadd.f32 0.0, %v408
    %v410 = vpop.f32.mrf.mxu0
    %411 = vmatprep.mubr.bf16.mxu0 0
    %412 = vmatmul.mubr.bf16.gmra.mxu0 %v356
    %v413 = vpop.f32.mrf.mxu0
    %v414 = vadd.f32 0.0, %v413
    %v415 = vpop.f32.mrf.mxu0
    %v416 = vpop.f32.mrf.mxu0
    %v417 = vadd.f32 0.0, %v416
    %v418 = vpop.f32.mrf.mxu0
    %419 = vmatprep.mubr.bf16.mxu0 0
    %420 = vmatmul.mubr.bf16.gmra.mxu0 %v357
    %v421 = vpop.f32.mrf.mxu0
    %v422 = vadd.f32 0.0, %v421
    %v423 = vpop.f32.mrf.mxu0
    %v424 = vpop.f32.mrf.mxu0
    %v425 = vadd.f32 0.0, %v424
    %v426 = vpop.f32.mrf.mxu0
    %427 = vmatprep.mubr.bf16.mxu0 0
    %428 = vmatmul.mubr.bf16.gmra.mxu0 %v358
    %v429 = vpop.f32.mrf.mxu0
    %v430 = vadd.f32 0.0, %v429
    %v431 = vpop.f32.mrf.mxu0
    %v432 = vpop.f32.mrf.mxu0
    %v433 = vadd.f32 0.0, %v432
    %v434 = vpop.f32.mrf.mxu0
    %435 = vmatprep.mubr.bf16.mxu0 0
    %436 = vmatmul.mubr.bf16.gmra.mxu0 %v359
    %v437 = vpop.f32.mrf.mxu0
    %v438 = vadd.f32 0.0, %v437
    %v439 = vpop.f32.mrf.mxu0
    %v440 = vpop.f32.mrf.mxu0
    %v441 = vadd.f32 0.0, %v440
    %v442 = vpop.f32.mrf.mxu0
    %443 = vmatprep.mubr.bf16.mxu0 0
    %444 = vmatmul.mubr.bf16.gmra.mxu0 %v360
    %v445 = vpop.f32.mrf.mxu0
    %v446 = vadd.f32 0.0, %v445
    %v447 = vpop.f32.mrf.mxu0
    %v448 = vpop.f32.mrf.mxu0
    %v449 = vadd.f32 0.0, %v448
    %v450 = vpop.f32.mrf.mxu0
    %451 = vmatprep.mubr.bf16.mxu0 0
    %452 = vmatmul.mubr.bf16.gmra.mxu0 %v361
    %v453 = vpop.f32.mrf.mxu0
    %v454 = vadd.f32 0.0, %v453
    %v455 = vpop.f32.mrf.mxu0
    %v456 = vpop.f32.mrf.mxu0
    %v457 = vadd.f32 0.0, %v456
    %v458 = vpop.f32.mrf.mxu0
    %459 = vmatprep.mubr.bf16.mxu0 0
    %460 = vmatmul.mubr.bf16.gmra.mxu0 %v362
    %v461 = vpop.f32.mrf.mxu0
    %v462 = vadd.f32 0.0, %v461
    %v463 = vpop.f32.mrf.mxu0
    %v464 = vpop.f32.mrf.mxu0
    %v465 = vadd.f32 0.0, %v464
    %v466 = vpop.f32.mrf.mxu0
    %467 = vdwg.mxu0
    %v468 = vmax.f32 %v406, 0.0
    %v469 = vmax.f32 %v409, 0.0
    %v470 = vmax.f32 %v414, 0.0
    %v471 = vmax.f32 %v417, 0.0
    %v472 = vmax.f32 %v422, 0.0
    %v473 = vmax.f32 %v425, 0.0
    %v474 = vmax.f32 %v430, 0.0
    %v475 = vmax.f32 %v433, 0.0
    %v476 = vmax.f32 %v438, 0.0
    %v477 = vmax.f32 %v441, 0.0
    %v478 = vmax.f32 %v446, 0.0
    %v479 = vmax.f32 %v449, 0.0
    %v480 = vmax.f32 %v454, 0.0
    %v481 = vmax.f32 %v457, 0.0
    %v482 = vmax.f32 %v462, 0.0
    %v483 = vmax.f32 %v465, 0.0
    %v484 = vpack.c.bf16 %v469, %v468
    %v485 = vpack.c.bf16 %v471, %v470
    %v486 = vpack.c.bf16 %v473, %v472
    %v487 = vpack.c.bf16 %v475, %v474
    %v488 = vpack.c.bf16 %v477, %v476
    %v489 = vpack.c.bf16 %v479, %v478
    %v490 = vpack.c.bf16 %v481, %v480
    %v491 = vpack.c.bf16 %v483, %v482
    %v492 = vld [vmem:[#allocation8] sm:$0xf]
    %v493 = vld [vmem:[#allocation8 + $0x4] sm:$0xf]
    %v494 = vld [vmem:[#allocation8 + $0x8] sm:$0xf]
    %v495 = vld [vmem:[#allocation8 + $0xc] sm:$0xf]
    %v496 = vld [vmem:[#allocation8 + $0x10] sm:$0xf]
    %v497 = vld [vmem:[#allocation8 + $0x14] sm:$0xf]
    %v498 = vld [vmem:[#allocation8 + $0x18] sm:$0xf]
    %v499 = vld [vmem:[#allocation8 + $0x1c] sm:$0xf]
    %v500 = vld [vmem:[#allocation8 + $0x20] sm:$0xf]
    %v501 = vld [vmem:[#allocation8 + $0x24] sm:$0xf]
    %v502 = vld [vmem:[#allocation8 + $0x28] sm:$0xf]
    %v503 = vld [vmem:[#allocation8 + $0x2c] sm:$0xf]
    %v504 = vld [vmem:[#allocation8 + $0x30] sm:$0xf]
    %v505 = vld [vmem:[#allocation8 + $0x34] sm:$0xf]
    %v506 = vld [vmem:[#allocation8 + $0x38] sm:$0xf]
    %v507 = vld [vmem:[#allocation8 + $0x3c] sm:$0xf]
    %v524 = vunpack.c.l.b16 %v492
    %v525 = vunpack.c.l.b16 %v493
    %v526 = vunpack.c.l.b16 %v494
    %v527 = vunpack.c.l.b16 %v495
    %v528 = vunpack.c.l.b16 %v496
    %v529 = vunpack.c.l.b16 %v497
    %v530 = vunpack.c.l.b16 %v498
    %v531 = vunpack.c.l.b16 %v499
    %v532 = vunpack.c.l.b16 %v500
    %v533 = vunpack.c.l.b16 %v501
    %v534 = vunpack.c.l.b16 %v502
    %v535 = vunpack.c.l.b16 %v503
    %v536 = vunpack.c.l.b16 %v504
    %v537 = vunpack.c.l.b16 %v505
    %v538 = vunpack.c.l.b16 %v506
    %v539 = vunpack.c.l.b16 %v507
    %v540 = vpack.c.b16 %v525, %v524
    %v541 = vpack.c.b16 %v527, %v526
    %v542 = vpack.c.b16 %v529, %v528
    %v543 = vpack.c.b16 %v531, %v530
    %v544 = vpack.c.b16 %v533, %v532
    %v545 = vpack.c.b16 %v535, %v534
    %v546 = vpack.c.b16 %v537, %v536
    %v547 = vpack.c.b16 %v539, %v538
    %556 = vmatprep.subr.bf16.mxu0 0
    %557 = vmatpush1.bf16.msra.mxu0 %v547
    %558 = vmatprep.subr.bf16.mxu0 0
    %559 = vmatpush1.bf16.msra.mxu0 %v546
    %560 = vmatprep.subr.bf16.mxu0 0
    %561 = vmatpush1.bf16.msra.mxu0 %v545
    %562 = vmatprep.subr.bf16.mxu0 0
    %563 = vmatpush1.bf16.msra.mxu0 %v544
    %564 = vmatprep.subr.bf16.mxu0 0
    %565 = vmatpush1.bf16.msra.mxu0 %v543
    %566 = vmatprep.subr.bf16.mxu0 0
    %567 = vmatpush1.bf16.msra.mxu0 %v542
    %568 = vmatprep.subr.bf16.mxu0 0
    %569 = vmatpush1.bf16.msra.mxu0 %v541
    %570 = vmatprep.subr.bf16.mxu0 0
    %571 = vmatpush1.bf16.msra.mxu0 %v540
    %572 = vmatprep.subr.bf16.mxu0 0
    %573 = vmatpush2.bf16.msra.mxu0 0
    %574 = vmatprep.subr.bf16.mxu0 0
    %575 = vmatpush2.bf16.msra.mxu0 0
    %576 = vmatprep.subr.bf16.mxu0 0
    %577 = vmatpush2.bf16.msra.mxu0 0
    %578 = vmatprep.subr.bf16.mxu0 0
    %579 = vmatpush2.bf16.msra.mxu0 0
    %580 = vmatprep.subr.bf16.mxu0 0
    %581 = vmatpush2.bf16.msra.mxu0 0
    %582 = vmatprep.subr.bf16.mxu0 0
    %583 = vmatpush2.bf16.msra.mxu0 0
    %584 = vmatprep.subr.bf16.mxu0 0
    %585 = vmatpush2.bf16.msra.mxu0 0
    %586 = vmatprep.subr.bf16.mxu0 0
    %587 = vmatpush2.bf16.msra.mxu0 0
    %588 = vmatprep.mubr.bf16.mxu0 0
    %589 = vmatmul.mubr.bf16.gmra.mxu0 %v484
    %v590 = vpop.f32.mrf.mxu0
    %v591 = vadd.f32 0.0, %v590
    %v592 = vpop.f32.mrf.mxu0
    %v593 = vpop.f32.mrf.mxu0
    %v594 = vadd.f32 0.0, %v593
    %v595 = vpop.f32.mrf.mxu0
    %596 = vmatprep.mubr.bf16.mxu0 0
    %597 = vmatmul.mubr.bf16.gmra.mxu0 %v485
    %v598 = vpop.f32.mrf.mxu0
    %v599 = vadd.f32 0.0, %v598
    %v600 = vpop.f32.mrf.mxu0
    %v601 = vpop.f32.mrf.mxu0
    %v602 = vadd.f32 0.0, %v601
    %v603 = vpop.f32.mrf.mxu0
    %604 = vmatprep.mubr.bf16.mxu0 0
    %605 = vmatmul.mubr.bf16.gmra.mxu0 %v486
    %v606 = vpop.f32.mrf.mxu0
    %v607 = vadd.f32 0.0, %v606
    %v608 = vpop.f32.mrf.mxu0
    %v609 = vpop.f32.mrf.mxu0
    %v610 = vadd.f32 0.0, %v609
    %v611 = vpop.f32.mrf.mxu0
    %612 = vmatprep.mubr.bf16.mxu0 0
    %613 = vmatmul.mubr.bf16.gmra.mxu0 %v487
    %v614 = vpop.f32.mrf.mxu0
    %v615 = vadd.f32 0.0, %v614
    %v616 = vpop.f32.mrf.mxu0
    %v617 = vpop.f32.mrf.mxu0
    %v618 = vadd.f32 0.0, %v617
    %v619 = vpop.f32.mrf.mxu0
    %620 = vmatprep.mubr.bf16.mxu0 0
    %621 = vmatmul.mubr.bf16.gmra.mxu0 %v488
    %v622 = vpop.f32.mrf.mxu0
    %v623 = vadd.f32 0.0, %v622
    %v624 = vpop.f32.mrf.mxu0
    %v625 = vpop.f32.mrf.mxu0
    %v626 = vadd.f32 0.0, %v625
    %v627 = vpop.f32.mrf.mxu0
    %628 = vmatprep.mubr.bf16.mxu0 0
    %629 = vmatmul.mubr.bf16.gmra.mxu0 %v489
    %v630 = vpop.f32.mrf.mxu0
    %v631 = vadd.f32 0.0, %v630
    %v632 = vpop.f32.mrf.mxu0
    %v633 = vpop.f32.mrf.mxu0
    %v634 = vadd.f32 0.0, %v633
    %v635 = vpop.f32.mrf.mxu0
    %636 = vmatprep.mubr.bf16.mxu0 0
    %637 = vmatmul.mubr.bf16.gmra.mxu0 %v490
    %v638 = vpop.f32.mrf.mxu0
    %v639 = vadd.f32 0.0, %v638
    %v640 = vpop.f32.mrf.mxu0
    %v641 = vpop.f32.mrf.mxu0
    %v642 = vadd.f32 0.0, %v641
    %v643 = vpop.f32.mrf.mxu0
    %644 = vmatprep.mubr.bf16.mxu0 0
    %645 = vmatmul.mubr.bf16.gmra.mxu0 %v491
    %v646 = vpop.f32.mrf.mxu0
    %v647 = vadd.f32 0.0, %v646
    %v648 = vpop.f32.mrf.mxu0
    %v649 = vpop.f32.mrf.mxu0
    %v650 = vadd.f32 0.0, %v649
    %v651 = vpop.f32.mrf.mxu0
    %652 = vdwg.mxu0
    %v653 = vpack.c.bf16 %v594, %v591
    %v654 = vpack.c.bf16 %v602, %v599
    %v655 = vpack.c.bf16 %v610, %v607
    %v656 = vpack.c.bf16 %v618, %v615
    %v657 = vpack.c.bf16 %v626, %v623
    %v658 = vpack.c.bf16 %v634, %v631
    %v659 = vpack.c.bf16 %v642, %v639
    %v660 = vpack.c.bf16 %v650, %v647
    %661 = vmatprep.subr.bf16.mxu0 0
    %662 = vmatpush1.bf16.msra.mxu0 %v660
    %663 = vmatprep.subr.bf16.mxu0 0
    %664 = vmatpush1.bf16.msra.mxu0 %v659
    %665 = vmatprep.subr.bf16.mxu0 0
    %666 = vmatpush1.bf16.msra.mxu0 %v658
    %667 = vmatprep.subr.bf16.mxu0 0
    %668 = vmatpush1.bf16.msra.mxu0 %v657
    %669 = vmatprep.subr.bf16.mxu0 0
    %670 = vmatpush1.bf16.msra.mxu0 %v656
    %671 = vmatprep.subr.bf16.mxu0 0
    %672 = vmatpush1.bf16.msra.mxu0 %v655
    %673 = vmatprep.subr.bf16.mxu0 0
    %674 = vmatpush1.bf16.msra.mxu0 %v654
    %675 = vmatprep.subr.bf16.mxu0 0
    %676 = vmatpush1.bf16.msra.mxu0 %v653
    %677 = vmatprep.subr.bf16.mxu0 0
    %678 = vmatpush2.bf16.msra.mxu0 0
    %679 = vmatprep.subr.bf16.mxu0 0
    %680 = vmatpush2.bf16.msra.mxu0 0
    %681 = vmatprep.subr.bf16.mxu0 0
    %682 = vmatpush2.bf16.msra.mxu0 0
    %683 = vmatprep.subr.bf16.mxu0 0
    %684 = vmatpush2.bf16.msra.mxu0 0
    %685 = vmatprep.subr.bf16.mxu0 0
    %686 = vmatpush2.bf16.msra.mxu0 0
    %687 = vmatprep.subr.bf16.mxu0 0
    %688 = vmatpush2.bf16.msra.mxu0 0
    %689 = vmatprep.subr.bf16.mxu0 0
    %690 = vmatpush2.bf16.msra.mxu0 0
    %691 = vmatprep.subr.bf16.mxu0 0
    %692 = vmatpush2.bf16.msra.mxu0 0
    %693 = vmatprep.mubr.bf16.mxu0 0
    %694 = vmatmul.mubr.bf16.gmra.mxu0 %v355
    %v695 = vpop.f32.mrf.mxu0
    %v696 = vadd.f32 0.0, %v695
    %v697 = vpop.f32.mrf.mxu0
    %v698 = vpop.f32.mrf.mxu0
    %v699 = vadd.f32 0.0, %v698
    %v700 = vpop.f32.mrf.mxu0
    %701 = vmatprep.mubr.bf16.mxu0 0
    %702 = vmatmul.mubr.bf16.gmra.mxu0 %v356
    %v703 = vpop.f32.mrf.mxu0
    %v704 = vadd.f32 0.0, %v703
    %v705 = vpop.f32.mrf.mxu0
    %v706 = vpop.f32.mrf.mxu0
    %v707 = vadd.f32 0.0, %v706
    %v708 = vpop.f32.mrf.mxu0
    %709 = vmatprep.mubr.bf16.mxu0 0
    %710 = vmatmul.mubr.bf16.gmra.mxu0 %v357
    %v711 = vpop.f32.mrf.mxu0
    %v712 = vadd.f32 0.0, %v711
    %v713 = vpop.f32.mrf.mxu0
    %v714 = vpop.f32.mrf.mxu0
    %v715 = vadd.f32 0.0, %v714
    %v716 = vpop.f32.mrf.mxu0
    %717 = vmatprep.mubr.bf16.mxu0 0
    %718 = vmatmul.mubr.bf16.gmra.mxu0 %v358
    %v719 = vpop.f32.mrf.mxu0
    %v720 = vadd.f32 0.0, %v719
    %v721 = vpop.f32.mrf.mxu0
    %v722 = vpop.f32.mrf.mxu0
    %v723 = vadd.f32 0.0, %v722
    %v724 = vpop.f32.mrf.mxu0
    %725 = vmatprep.mubr.bf16.mxu0 0
    %726 = vmatmul.mubr.bf16.gmra.mxu0 %v359
    %v727 = vpop.f32.mrf.mxu0
    %v728 = vadd.f32 0.0, %v727
    %v729 = vpop.f32.mrf.mxu0
    %v730 = vpop.f32.mrf.mxu0
    %v731 = vadd.f32 0.0, %v730
    %v732 = vpop.f32.mrf.mxu0
    %733 = vmatprep.mubr.bf16.mxu0 0
    %734 = vmatmul.mubr.bf16.gmra.mxu0 %v360
    %v735 = vpop.f32.mrf.mxu0
    %v736 = vadd.f32 0.0, %v735
    %v737 = vpop.f32.mrf.mxu0
    %v738 = vpop.f32.mrf.mxu0
    %v739 = vadd.f32 0.0, %v738
    %v740 = vpop.f32.mrf.mxu0
    %741 = vmatprep.mubr.bf16.mxu0 0
    %742 = vmatmul.mubr.bf16.gmra.mxu0 %v361
    %v743 = vpop.f32.mrf.mxu0
    %v744 = vadd.f32 0.0, %v743
    %v745 = vpop.f32.mrf.mxu0
    %v746 = vpop.f32.mrf.mxu0
    %v747 = vadd.f32 0.0, %v746
    %v748 = vpop.f32.mrf.mxu0
    %749 = vmatprep.mubr.bf16.mxu0 0
    %750 = vmatmul.mubr.bf16.gmra.mxu0 %v362
    %v751 = vpop.f32.mrf.mxu0
    %v752 = vadd.f32 0.0, %v751
    %v753 = vpop.f32.mrf.mxu0
    %v754 = vpop.f32.mrf.mxu0
    %v755 = vadd.f32 0.0, %v754
    %v756 = vpop.f32.mrf.mxu0
    %757 = vdwg.mxu0
    %v758 = vlaneseq
    %v759 = vand.u32 %v758, 127
    %vm760 = vcmp.lt.s32.totalorder %v759, 7
    %v761 = vsel %vm760, %v696, -1e+30
    %v762 = vsel %vm760, %v699, -1e+30
    %v763 = vsel %vm760, %v704, -1e+30
    %v764 = vsel %vm760, %v707, -1e+30
    %v765 = vsel %vm760, %v712, -1e+30
    %v766 = vsel %vm760, %v715, -1e+30
    %v767 = vsel %vm760, %v720, -1e+30
    %v768 = vsel %vm760, %v723, -1e+30
    %v769 = vsel %vm760, %v728, -1e+30
    %v770 = vsel %vm760, %v731, -1e+30
    %v771 = vsel %vm760, %v736, -1e+30
    %v772 = vsel %vm760, %v739, -1e+30
    %v773 = vsel %vm760, %v744, -1e+30
    %v774 = vsel %vm760, %v747, -1e+30
    %v775 = vsel %vm760, %v752, -1e+30
    %v776 = vsel %vm760, %v755, -1e+30
    %777 = vmax.xlane.f32.xlu0 %v761
    %v778 = vpop.xlane.xlu0 %777
    %779 = vmax.xlane.f32.xlu0 %v762
    %v780 = vpop.xlane.xlu0 %779
    %781 = vmax.xlane.f32.xlu0 %v763
    %v782 = vpop.xlane.xlu0 %781
    %783 = vmax.xlane.f32.xlu0 %v764
    %v784 = vpop.xlane.xlu0 %783
    %785 = vmax.xlane.f32.xlu0 %v765
    %v786 = vpop.xlane.xlu0 %785
    %787 = vmax.xlane.f32.xlu0 %v766
    %v788 = vpop.xlane.xlu0 %787
    %789 = vmax.xlane.f32.xlu0 %v767
    %v790 = vpop.xlane.xlu0 %789
    %791 = vmax.xlane.f32.xlu0 %v768
    %v792 = vpop.xlane.xlu0 %791
    %793 = vmax.xlane.f32.xlu0 %v769
    %v794 = vpop.xlane.xlu0 %793
    %795 = vmax.xlane.f32.xlu0 %v770
    %v796 = vpop.xlane.xlu0 %795
    %797 = vmax.xlane.f32.xlu0 %v771
    %v798 = vpop.xlane.xlu0 %797
    %799 = vmax.xlane.f32.xlu0 %v772
    %v800 = vpop.xlane.xlu0 %799
    %801 = vmax.xlane.f32.xlu0 %v773
    %v802 = vpop.xlane.xlu0 %801
    %803 = vmax.xlane.f32.xlu0 %v774
    %v804 = vpop.xlane.xlu0 %803
    %805 = vmax.xlane.f32.xlu0 %v775
    %v806 = vpop.xlane.xlu0 %805
    %807 = vmax.xlane.f32.xlu0 %v776
    %v808 = vpop.xlane.xlu0 %807
    %v809 = vsub.f32 %v761, %v778
    %v810 = vsub.f32 %v762, %v780
    %v811 = vsub.f32 %v763, %v782
    %v812 = vsub.f32 %v764, %v784
    %v813 = vsub.f32 %v765, %v786
    %v814 = vsub.f32 %v766, %v788
    %v815 = vsub.f32 %v767, %v790
    %v816 = vsub.f32 %v768, %v792
    %v817 = vsub.f32 %v769, %v794
    %v818 = vsub.f32 %v770, %v796
    %v819 = vsub.f32 %v771, %v798
    %v820 = vsub.f32 %v772, %v800
    %v821 = vsub.f32 %v773, %v802
    %v822 = vsub.f32 %v774, %v804
    %v823 = vsub.f32 %v775, %v806
    %v824 = vsub.f32 %v776, %v808
    %v825 = vmul.f32 %v809, 1.442695
    %v826 = vpow.pop %v825
    %v827 = vmul.f32 %v810, 1.442695
    %v828 = vpow.pop %v827
    %v829 = vmul.f32 %v811, 1.442695
    %v830 = vpow.pop %v829
    %v831 = vmul.f32 %v812, 1.442695
    %v832 = vpow.pop %v831
    %v833 = vmul.f32 %v813, 1.442695
    %v834 = vpow.pop %v833
    %v835 = vmul.f32 %v814, 1.442695
    %v836 = vpow.pop %v835
    %v837 = vmul.f32 %v815, 1.442695
    %v838 = vpow.pop %v837
    %v839 = vmul.f32 %v816, 1.442695
    %v840 = vpow.pop %v839
    %v841 = vmul.f32 %v817, 1.442695
    %v842 = vpow.pop %v841
    %v843 = vmul.f32 %v818, 1.442695
    %v844 = vpow.pop %v843
    %v845 = vmul.f32 %v819, 1.442695
    %v846 = vpow.pop %v845
    %v847 = vmul.f32 %v820, 1.442695
    %v848 = vpow.pop %v847
    %v849 = vmul.f32 %v821, 1.442695
    %v850 = vpow.pop %v849
    %v851 = vmul.f32 %v822, 1.442695
    %v852 = vpow.pop %v851
    %v853 = vmul.f32 %v823, 1.442695
    %v854 = vpow.pop %v853
    %v855 = vmul.f32 %v824, 1.442695
    %v856 = vpow.pop %v855
    %857 = vadd.xlane.f32.xlu0 %v826
    %v858 = vpop.xlane.xlu0 %857
    %859 = vadd.xlane.f32.xlu0 %v828
    %v860 = vpop.xlane.xlu0 %859
    %861 = vadd.xlane.f32.xlu0 %v830
    %v862 = vpop.xlane.xlu0 %861
    %863 = vadd.xlane.f32.xlu0 %v832
    %v864 = vpop.xlane.xlu0 %863
    %865 = vadd.xlane.f32.xlu0 %v834
    %v866 = vpop.xlane.xlu0 %865
    %867 = vadd.xlane.f32.xlu0 %v836
    %v868 = vpop.xlane.xlu0 %867
    %869 = vadd.xlane.f32.xlu0 %v838
    %v870 = vpop.xlane.xlu0 %869
    %871 = vadd.xlane.f32.xlu0 %v840
    %v872 = vpop.xlane.xlu0 %871
    %873 = vadd.xlane.f32.xlu0 %v842
    %v874 = vpop.xlane.xlu0 %873
    %875 = vadd.xlane.f32.xlu0 %v844
    %v876 = vpop.xlane.xlu0 %875
    %877 = vadd.xlane.f32.xlu0 %v846
    %v878 = vpop.xlane.xlu0 %877
    %879 = vadd.xlane.f32.xlu0 %v848
    %v880 = vpop.xlane.xlu0 %879
    %881 = vadd.xlane.f32.xlu0 %v850
    %v882 = vpop.xlane.xlu0 %881
    %883 = vadd.xlane.f32.xlu0 %v852
    %v884 = vpop.xlane.xlu0 %883
    %885 = vadd.xlane.f32.xlu0 %v854
    %v886 = vpop.xlane.xlu0 %885
    %887 = vadd.xlane.f32.xlu0 %v856
    %v888 = vpop.xlane.xlu0 %887
    %v889 = vlog2.pop %v858
    %v890 = vmul.f32 %v889, 0.6931472
    %v891 = vlog2.pop %v860
    %v892 = vmul.f32 %v891, 0.6931472
    %v893 = vlog2.pop %v862
    %v894 = vmul.f32 %v893, 0.6931472
    %v895 = vlog2.pop %v864
    %v896 = vmul.f32 %v895, 0.6931472
    %v897 = vlog2.pop %v866
    %v898 = vmul.f32 %v897, 0.6931472
    %v899 = vlog2.pop %v868
    %v900 = vmul.f32 %v899, 0.6931472
    %v901 = vlog2.pop %v870
    %v902 = vmul.f32 %v901, 0.6931472
    %v903 = vlog2.pop %v872
    %v904 = vmul.f32 %v903, 0.6931472
    %v905 = vlog2.pop %v874
    %v906 = vmul.f32 %v905, 0.6931472
    %v907 = vlog2.pop %v876
    %v908 = vmul.f32 %v907, 0.6931472
    %v909 = vlog2.pop %v878
    %v910 = vmul.f32 %v909, 0.6931472
    %v911 = vlog2.pop %v880
    %v912 = vmul.f32 %v911, 0.6931472
    %v913 = vlog2.pop %v882
    %v914 = vmul.f32 %v913, 0.6931472
    %v915 = vlog2.pop %v884
    %v916 = vmul.f32 %v915, 0.6931472
    %v917 = vlog2.pop %v886
    %v918 = vmul.f32 %v917, 0.6931472
    %v919 = vlog2.pop %v888
    %v920 = vmul.f32 %v919, 0.6931472
    %v921 = vsub.f32 %v809, %v890
    %v922 = vsub.f32 %v810, %v892
    %v923 = vsub.f32 %v811, %v894
    %v924 = vsub.f32 %v812, %v896
    %v925 = vsub.f32 %v813, %v898
    %v926 = vsub.f32 %v814, %v900
    %v927 = vsub.f32 %v815, %v902
    %v928 = vsub.f32 %v816, %v904
    %v929 = vsub.f32 %v817, %v906
    %v930 = vsub.f32 %v818, %v908
    %v931 = vsub.f32 %v819, %v910
    %v932 = vsub.f32 %v820, %v912
    %v933 = vsub.f32 %v821, %v914
    %v934 = vsub.f32 %v822, %v916
    %v935 = vsub.f32 %v823, %v918
    %v936 = vsub.f32 %v824, %v920
    %937 = vst [vmem:[#allocation10] sm:$0xff] %v921
    %938 = vst [vmem:[#allocation10 + $0x8] sm:$0xff] %v922
    %939 = vst [vmem:[#allocation10 + $0x10] sm:$0xff] %v923
    %940 = vst [vmem:[#allocation10 + $0x18] sm:$0xff] %v924
    %941 = vst [vmem:[#allocation10 + $0x20] sm:$0xff] %v925
    %942 = vst [vmem:[#allocation10 + $0x28] sm:$0xff] %v926
    %943 = vst [vmem:[#allocation10 + $0x30] sm:$0xff] %v927
    %944 = vst [vmem:[#allocation10 + $0x38] sm:$0xff] %v928
    %945 = vst [vmem:[#allocation10 + $0x40] sm:$0xff] %v929
    %946 = vst [vmem:[#allocation10 + $0x48] sm:$0xff] %v930
    %947 = vst [vmem:[#allocation10 + $0x50] sm:$0xff] %v931
    %948 = vst [vmem:[#allocation10 + $0x58] sm:$0xff] %v932
    %949 = vst [vmem:[#allocation10 + $0x60] sm:$0xff] %v933
    %950 = vst [vmem:[#allocation10 + $0x68] sm:$0xff] %v934
    %951 = vst [vmem:[#allocation10 + $0x70] sm:$0xff] %v935
    %952 = vst [vmem:[#allocation10 + $0x78] sm:$0xff] %v936
    // Predicated region
    $region34: #{tpu_custom_call.1} parent=1 // pred_check
      _
    $region35: #{tpu_custom_call.1} parent=1 // pred_check_branch
      %954 = sbr.rel (0) target = $region37
    $region36: #{tpu_custom_call.1} parent=1 // pred_region
      %s956 = ssub.s32 2048, 2048
      %957 = vsyncadd [#allocation4], %s956
      %s958 = sshll.u32 [#allocation10], 4
      %s959 = int_to_ptr.vmem [resolvable:$true] %s958
      %964 = dma.vmem_to_hbm [thread:$0]  %s959, 2048, %s4, [#allocation4], 128, 128, 8
    $region37: #{tpu_custom_call.1} parent=1 // pred_fallthru
      _
    // Predicated region
    $region38: #{tpu_custom_call.1} parent=1 // pred_check
      _
    $region39: #{tpu_custom_call.1} parent=1 // pred_check_branch
      %966 = sbr.rel (0) target = $region41
    $region40: #{tpu_custom_call.1} parent=1 // pred_region
      %967 = dma.done [#allocation4], 2048
    $region41: #{tpu_custom_call.1} parent=1 // pred_fallthru
      _
    %968 = vsyncpa [#allocation3], 1
    %969 = vsyncpa [#allocation6], 1
    %970 = vsyncpa [#allocation9], 1
    %971 = vsyncpa [#allocation4], 1

</llo_original>
